<compile_context>
chip_gen: v6e
topology: v6e:2x2x1
jax: 0.10.0
libtpu: 0.0.40
codegen_flags: <defaults>
</compile_context>

<pallas_src>
import jax
import jax.numpy as jnp
from jax.experimental import pallas as pl
from jax.experimental.pallas import tpu as pltpu


def _round_up(a, b):
    return ((a + b - 1) // b) * b


def _pick_ff_chunk(dim_ff, dim_model, itemsize, budget_bytes=8 * 1024 * 1024):
    """Largest multiple-of-128 divisor of dim_ff whose W1+W2 chunk (including the
    2x pipeline double-buffer) fits the VMEM budget; falls back to full dim_ff."""
    def chunk_bytes(tf):
        return 2 * 2 * tf * dim_model * itemsize  # W1 chunk + W2 chunk, x2 buffers
    if dim_ff <= 128 or chunk_bytes(dim_ff) <= budget_bytes:
        return dim_ff
    best = None
    tf = 128
    while tf < dim_ff:
        if dim_ff % tf == 0 and chunk_bytes(tf) <= budget_bytes:
            best = tf
        tf += 128
    return best if best is not None else dim_ff


def ffn_kernel(x_ref, w1_ref, b1_ref, w2_ref, b2_ref, o_ref, acc_ref):
    # x_ref: (tm, dm)   w1_ref: (dm, tf)   b1_ref: (1, tf)  f32
    # w2_ref: (tf, dm)  b2_ref: (1, dm) f32
    # o_ref:  (tm, dm)  acc_ref: (tm, dm) f32 scratch (resident across ff chunks)
    k = pl.program_id(1)

    @pl.when(k == 0)
    def _init():
        acc_ref[...] = jnp.zeros_like(acc_ref)

    # Layer 1 for this ff chunk: the dim_model reduction is complete within the
    # chunk, so per-chunk bias + ReLU (in f32) is exact.
    h = jnp.dot(x_ref[...], w1_ref[...], preferred_element_type=jnp.float32)
    h = jnp.maximum(h + b1_ref[...], 0.0)

    # Layer 2 partial product over this ff chunk, accumulated in f32.
    # (h is downcast to the weight compute dtype for MXU throughput.)
    acc_ref[...] += jnp.dot(h.astype(w2_ref.dtype), w2_ref[...],
                            preferred_element_type=jnp.float32)

    @pl.when(k == pl.num_programs(1) - 1)
    def _finalize():
        o_ref[...] = (acc_ref[...] + b2_ref[...]).astype(o_ref.dtype)


def ffn_pallas(x, w1, b1, w2, b2, *, tm=256, ff_chunk=None,
               compute_dtype=None, vmem_limit_bytes=64 * 1024 * 1024):
    """x: (batch, seq, dim_model); w1: (dim_model, dim_ff) [pre-transposed];
       b1: (dim_ff,); w2: (dim_ff, dim_model) [pre-transposed]; b2: (dim_model,).
       compute_dtype: dtype of the matmul operands (e.g. jnp.bfloat16 for MXU
       throughput on v6e/v7x); accumulation/bias/ReLU stay in f32."""
    batch, seq, dim_model = x.shape
    dim_ff = w1.shape[1]
    out_dtype = x.dtype
    if compute_dtype is None:
        compute_dtype = x.dtype
    itemsize = jnp.dtype(compute_dtype).itemsize

    M = batch * seq
    # Row tile: MXU-aligned (multiple of 8 for f32 / 16 for bf16), clamped so a
    # tiny problem still fits one tile.  Default 256 = MXU row dim on v6e/v7x
    # and a multiple of 128 (v5e MXU).
    row_align = 8 * (4 // itemsize)
    tm = max(row_align, min(_round_up(tm, row_align), _round_up(M, row_align)))

    if ff_chunk is None:
        ff_chunk = _pick_ff_chunk(dim_ff, dim_model, itemsize)
    num_ff = pl.cdiv(dim_ff, ff_chunk)  # divides exactly by construction

    x2 = x.reshape(M, dim_model).astype(compute_dtype)
    w1c = w1.astype(compute_dtype)
    w2c = w2.astype(compute_dtype)
    b1_2 = b1.reshape(1, dim_ff).astype(jnp.float32)
    b2_2 = b2.reshape(1, dim_model).astype(jnp.float32)

    grid = (pl.cdiv(M, tm), num_ff)

    flops = 4 * M * dim_model * dim_ff
    bytes_accessed = int(
        M * dim_model * itemsize                         # x
        + 2 * dim_model * dim_ff * itemsize              # W1 + W2
        + (dim_ff + dim_model) * 4                       # biases (f32)
        + M * dim_model * jnp.dtype(out_dtype).itemsize  # out
    )

    out = pl.pallas_call(
        ffn_kernel,
        out_shape=jax.ShapeDtypeStruct((M, dim_model), out_dtype),
        grid_spec=pltpu.PrefetchScalarGridSpec(
            num_scalar_prefetch=0,
            grid=grid,
            in_specs=[
                # x tile: constant over the ff axis -> fetched once per row tile.
                pl.BlockSpec((tm, dim_model), lambda i, k: (i, 0)),
                # Weight/bias chunks stream over the ff (reduction) axis; their
                # double buffering is what the ff-chunk budget accounts for.
                pl.BlockSpec((dim_model, ff_chunk), lambda i, k: (0, k)),  # W1
                pl.BlockSpec((1, ff_chunk), lambda i, k: (0, k)),          # b1
                pl.BlockSpec((ff_chunk, dim_model), lambda i, k: (k, 0)),  # W2
                pl.BlockSpec((1, dim_model), lambda i, k: (0, 0)),         # b2
            ],
            out_specs=pl.BlockSpec((tm, dim_model), lambda i, k: (i, 0)),
            scratch_shapes=[pltpu.VMEM((tm, dim_model), jnp.float32)],
        ),
        compiler_params=pltpu.CompilerParams(
            dimension_semantics=("parallel", "arbitrary"),
            vmem_limit_bytes=vmem_limit_bytes,
        ),
        cost_estimate=pl.CostEstimate(
            flops=flops, transcendentals=0, bytes_accessed=bytes_accessed),
    )(x2, w1c, b1_2, w2c, b2_2)
    return out.reshape(batch, seq, dim_model)


def ffn_ref(x, w1, b1, w2, b2):
    h = jnp.maximum(x @ w1 + b1, 0.0)
    return h @ w2 + b2


if __name__ == "__main__":
    # Small but lane-dense shapes (dim_model multiple of 128 so the output
    # stores are unmasked) with M = batch*seq = 512 -> a 2-program parallel
    # grid axis at tm=256.
    batch, seq, dim_model, dim_ff = 4, 128, 128, 256

    key = jax.random.PRNGKey(0)
    k1, k2, k3, k4, k5 = jax.random.split(key, 5)

    # nn.Linear-style init: U(-1/sqrt(fan_in), 1/sqrt(fan_in)); weights stored
    # pre-transposed as (in_features, out_features).
    bound1 = 1.0 / jnp.sqrt(dim_model)
    bound2 = 1.0 / jnp.sqrt(dim_ff)
    w1 = jax.random.uniform(k1, (dim_model, dim_ff), jnp.float32, -bound1, bound1)
    b1 = jax.random.uniform(k2, (dim_ff,), jnp.float32, -bound1, bound1)
    w2 = jax.random.uniform(k3, (dim_ff, dim_model), jnp.float32, -bound2, bound2)
    b2 = jax.random.uniform(k4, (dim_model,), jnp.float32, -bound2, bound2)

    x = jax.random.normal(k5, (batch, seq, dim_model), jnp.float32)

    ref = ffn_ref(x, w1, b1, w2, b2)

    # f32 operand path (default: compute dtype follows x.dtype).
    out_f32 = ffn_pallas(x, w1, b1, w2, b2)
    jax.block_until_ready(out_f32)
    assert out_f32.shape == (batch, seq, dim_model)
    assert jnp.allclose(out_f32, ref, atol=1e-4, rtol=1e-4)

    # bf16 operand path (recommended for v6e/v7x MXU throughput); f32 accumulate.
    out_bf16 = ffn_pallas(x, w1, b1, w2, b2, compute_dtype=jnp.bfloat16)
    jax.block_until_ready(out_bf16)
    assert out_bf16.shape == (batch, seq, dim_model)
    assert jnp.allclose(out_bf16, ref, atol=5e-2, rtol=5e-2)

    print("KERNEL_OK")
</pallas_src>

<mosaic_0001>
module attributes {stable_mosaic.version = 11 : i64} {
  func.func @ffn_kernel(%arg0: i32, %arg1: i32, %arg2: memref<256x128xf32, #tpu.memory_space<vmem>>, %arg3: memref<128x256xf32, #tpu.memory_space<vmem>>, %arg4: memref<1x256xf32, #tpu.memory_space<vmem>>, %arg5: memref<256x128xf32, #tpu.memory_space<vmem>>, %arg6: memref<1x128xf32, #tpu.memory_space<vmem>>, %arg7: memref<256x128xf32, #tpu.memory_space<vmem>>, %arg8: memref<256x128xf32, #tpu.memory_space<vmem>>) attributes {dimension_semantics = [#tpu.dimension_semantics<parallel>, #tpu.dimension_semantics<arbitrary>], iteration_bounds = array<i64: 2, 1>, scalar_prefetch = 0 : i64, scratch_operands = 1 : i64, tpu.core_type = #tpu.core_type<tc>, window_params = [{transform_indices = @transform_0, window_bounds = array<i64: 256, 128>}, {transform_indices = @transform_1, window_bounds = array<i64: 128, 256>}, {transform_indices = @transform_2, window_bounds = array<i64: 1, 256>}, {transform_indices = @transform_3, window_bounds = array<i64: 256, 128>}, {pipeline_mode = #tpu.pipeline_mode<synchronous>, transform_indices = @transform_4, window_bounds = array<i64: 1, 128>}, {transform_indices = @transform_5, window_bounds = array<i64: 256, 128>}]} {
    %c0_i32 = arith.constant 0 : i32
    %0 = arith.cmpi eq, %arg1, %c0_i32 : i32
    %1 = arith.extui %0 : i1 to i32
    %c0_i32_0 = arith.constant 0 : i32
    %2 = arith.cmpi ne, %1, %c0_i32_0 : i32
    scf.if %2 {
      %cst_16 = arith.constant 0.000000e+00 : f32
      %19 = vector.broadcast %cst_16 : f32 to vector<256x128xf32>
      %c0_17 = arith.constant 0 : index
      %c0_18 = arith.constant 0 : index
      %20 = vector.load %arg8[%c0_17, %c0_18] : memref<256x128xf32, #tpu.memory_space<vmem>>, vector<256x128xf32>
      tpu.vector_store %arg8[%c0_17, %c0_18], %19 {strides = array<i32>} : memref<256x128xf32, #tpu.memory_space<vmem>>, vector<256x128xf32>,
    } else {
    }
    %c0 = arith.constant 0 : index
    %c0_1 = arith.constant 0 : index
    %3 = vector.load %arg2[%c0, %c0_1] : memref<256x128xf32, #tpu.memory_space<vmem>>, vector<256x128xf32>
    %c0_2 = arith.constant 0 : index
    %c0_3 = arith.constant 0 : index
    %4 = vector.load %arg3[%c0_2, %c0_3] : memref<128x256xf32, #tpu.memory_space<vmem>>, vector<128x256xf32>
    %cst = arith.constant dense<0.000000e+00> : vector<256x256xf32>
    %5 = tpu.matmul %3, %4, %cst {dimension_numbers = #tpu.dot_dimension_numbers<[1], [0], [0], [1], [0, 0, 1, 1], [], []>} : vector<256x128xf32>, vector<128x256xf32>, vector<256x256xf32> -> vector<256x256xf32>
    %c0_4 = arith.constant 0 : index
    %c0_5 = arith.constant 0 : index
    %6 = vector.load %arg4[%c0_4, %c0_5] : memref<1x256xf32, #tpu.memory_space<vmem>>, vector<1x256xf32>
    %7 = vector.broadcast %6 : vector<1x256xf32> to vector<256x256xf32>
    %8 = arith.addf %5, %7 : vector<256x256xf32>
    %cst_6 = arith.constant 0.000000e+00 : f32
    %9 = vector.broadcast %cst_6 : f32 to vector<256x256xf32>
    %10 = arith.maximumf %8, %9 : vector<256x256xf32>
    %c0_7 = arith.constant 0 : index
    %c0_8 = arith.constant 0 : index
    %11 = vector.load %arg8[%c0_7, %c0_8] : memref<256x128xf32, #tpu.memory_space<vmem>>, vector<256x128xf32>
    %c0_9 = arith.constant 0 : index
    %c0_10 = arith.constant 0 : index
    %12 = vector.load %arg5[%c0_9, %c0_10] : memref<256x128xf32, #tpu.memory_space<vmem>>, vector<256x128xf32>
    %cst_11 = arith.constant dense<0.000000e+00> : vector<256x128xf32>
    %13 = tpu.matmul %10, %12, %cst_11 {dimension_numbers = #tpu.dot_dimension_numbers<[1], [0], [0], [1], [0, 0, 1, 1], [], []>} : vector<256x256xf32>, vector<256x128xf32>, vector<256x128xf32> -> vector<256x128xf32>
    %14 = arith.addf %11, %13 : vector<256x128xf32>
    %c0_12 = arith.constant 0 : index
    %c0_13 = arith.constant 0 : index
    %15 = vector.load %arg8[%c0_12, %c0_13] : memref<256x128xf32, #tpu.memory_space<vmem>>, vector<256x128xf32>
    tpu.vector_store %arg8[%c0_12, %c0_13], %14 {strides = array<i32>} : memref<256x128xf32, #tpu.memory_space<vmem>>, vector<256x128xf32>,
    %c0_i32_14 = arith.constant 0 : i32
    %16 = arith.cmpi eq, %arg1, %c0_i32_14 : i32
    %17 = arith.extui %16 : i1 to i32
    %c0_i32_15 = arith.constant 0 : i32
    %18 = arith.cmpi ne, %17, %c0_i32_15 : i32
    scf.if %18 {
      %c0_16 = arith.constant 0 : index
      %c0_17 = arith.constant 0 : index
      %19 = vector.load %arg8[%c0_16, %c0_17] : memref<256x128xf32, #tpu.memory_space<vmem>>, vector<256x128xf32>
      %c0_18 = arith.constant 0 : index
      %c0_19 = arith.constant 0 : index
      %20 = vector.load %arg6[%c0_18, %c0_19] : memref<1x128xf32, #tpu.memory_space<vmem>>, vector<1x128xf32>
      %21 = vector.broadcast %20 : vector<1x128xf32> to vector<256x128xf32>
      %22 = arith.addf %19, %21 : vector<256x128xf32>
      %c0_20 = arith.constant 0 : index
      %c0_21 = arith.constant 0 : index
      %23 = vector.load %arg7[%c0_20, %c0_21] : memref<256x128xf32, #tpu.memory_space<vmem>>, vector<256x128xf32>
      tpu.vector_store %arg7[%c0_20, %c0_21], %22 {strides = array<i32>} : memref<256x128xf32, #tpu.memory_space<vmem>>, vector<256x128xf32>,
    } else {
    }
    return
  }
  func.func @transform_0(%arg0: i32, %arg1: i32) -> (i32, i32) {
    %c0_i32 = arith.constant 0 : i32
    %c0_i32_0 = arith.constant 0 : i32
    return %arg0, %c0_i32 : i32, i32
  }
  func.func @transform_1(%arg0: i32, %arg1: i32) -> (i32, i32) {
    %c0_i32 = arith.constant 0 : i32
    %c0_i32_0 = arith.constant 0 : i32
    return %c0_i32, %arg1 : i32, i32
  }
  func.func @transform_2(%arg0: i32, %arg1: i32) -> (i32, i32) {
    %c0_i32 = arith.constant 0 : i32
    %c0_i32_0 = arith.constant 0 : i32
    return %c0_i32, %arg1 : i32, i32
  }
  func.func @transform_3(%arg0: i32, %arg1: i32) -> (i32, i32) {
    %c0_i32 = arith.constant 0 : i32
    %c0_i32_0 = arith.constant 0 : i32
    return %arg1, %c0_i32 : i32, i32
  }
  func.func @transform_4(%arg0: i32, %arg1: i32) -> (i32, i32) {
    %c0_i32 = arith.constant 0 : i32
    %c0_i32_0 = arith.constant 0 : i32
    %c0_i32_1 = arith.constant 0 : i32
    return %c0_i32, %c0_i32_0 : i32, i32
  }
  func.func @transform_5(%arg0: i32, %arg1: i32) -> (i32, i32) {
    %c0_i32 = arith.constant 0 : i32
    %c0_i32_0 = arith.constant 0 : i32
    return %arg0, %c0_i32 : i32, i32
  }
}

</mosaic_0001>

<llo_original>
// kernel: tpu_custom_call.1
$region0: #{tpu_custom_call.1}
  #allocation0 [shape = 'u32[]', space=smem, size = 0x4, offset = 0x4, fixed_abs, tag = 'smem constant byte address 0x4 - core index']
  #allocation1 [shape = 'u32[144,128]{1,0:T(1,128)}', space=vmem, size = 0x12000, scoped, tag = 'internal scratch']
  #allocation2 [shape = 'f32[256,128]{1,0:T(8,128)}', space=vmem, size = 0x20000, scoped, tag = 'scratch operand']
  %s0 = inlined_call_operand.hbm [shape: f32[512,128], index: 0, kind: input, shape index: {}]
  %s1 = inlined_call_operand.hbm [shape: f32[128,256], index: 1, kind: input, shape index: {}]
  %s2 = inlined_call_operand.vmem [shape: f32[1,256], index: 2, kind: input, shape index: {}]
  %s3 = inlined_call_operand.hbm [shape: f32[256,128], index: 3, kind: input, shape index: {}]
  %s4 = inlined_call_operand.vmem [shape: f32[1,128], index: 4, kind: input, shape index: {}]
  %s5 = inlined_call_operand.hbm [shape: f32[512,128], index: 5, kind: output, shape index: {}]
  %s6 = sld [smem:[#allocation0]]
  $region73: #{tpu_custom_call.1} parent=0
    _
  %s8 = ssub.s32 1, %s6
  %s9 = scalar_select 0, %s8, %s6
  $region1: #{tpu_custom_call.1} parent=0
    #allocation3 [shape = 'u8[262144]{0}', space=vmem, size = 0x40000, scoped, tag = 'input window, operand 0']
    #allocation4 [shape = 's32[2]{0}', space=sflag, size = 0x8, scoped, tag = 'scoped memory for tpu_custom_call.1']
    #allocation5 [shape = 's32[2]{0}', space=sflag, size = 0x8, scoped, tag = 'scoped memory for tpu_custom_call.1']
    #allocation6 [shape = 'u8[131072]{0}', space=vmem, size = 0x20000, scoped, tag = 'input window, operand 1, single buffered']
    #allocation7 [shape = 's32[1]{0}', space=sflag, size = 0x4, scoped, tag = 'scoped memory for tpu_custom_call.1']
    #allocation8 [shape = 'u8[131072]{0}', space=vmem, size = 0x20000, scoped, tag = 'input window, operand 3, single buffered']
    #allocation9 [shape = 'u8[262144]{0}', space=vmem, size = 0x40000, scoped, tag = 'output window, operand 0']
    %10 = vsyncpa [#allocation4], 0
    %s11 = scalar_lea.sflag [#allocation4], 1
    %12 = vsyncpa %s11, 0
    %13 = vsyncpa [#allocation7], 0
    %14 = vsyncpa [#allocation5], 0
    %s15 = scalar_lea.sflag [#allocation5], 1
    %16 = vsyncpa %s15, 0
    loop: start=0, step=1, limit=4
    $region2: #{tpu_custom_call.1} parent=1 // loop_pre_header
      _
    $region3: #{tpu_custom_call.1} parent=1 // loop_header
      %s18 = sphi 0, %s22
      %p19 = scmp.ge.s32.totalorder %s18, 4
      %s25 = sphi 0, %s37
      %s26 = sphi 0, %s33
      %s27 = sphi 0, %s25
      %s28 = sphi 0, %s26
      %s29 = sphi 0, %s27
      %s30 = sphi 0, %s28
      %s40 = sphi 0, %s42
      %s43 = sphi 0, %s40
      %s44 = sphi 0, %s43
      %s60 = sphi 0, %s44
      %s66 = sphi 0, %s68
      %s69 = sphi 0, %s66
      %s70 = sphi 0, %s69
      %s86 = sphi 0, %s70
      %s92 = sphi 0, %s94
      %s95 = sphi 0, %s92
      %s96 = sphi 0, %s95
      %s112 = sphi 0, %s96
      %s118 = sphi 0, %s120
      %s121 = sphi 0, %s118
      %s122 = sphi 0, %s121
      %s138 = sphi 0, %s122
      %s142 = sphi 0, %s142
      %s144 = sphi 0, %s142
      %s145 = sphi 0, %s144
      %s159 = sphi 0, %s145
      %s165 = sphi 0, %s167
      %s168 = sphi 0, %s165
      %s169 = sphi 0, %s168
      %s185 = sphi 0, %s169
    $region4: #{tpu_custom_call.1} parent=1 // loop_header_branch
      %21 = sbr.rel (%p19) target = $region8
    $region5: #{tpu_custom_call.1} parent=1 // loop_body
      %s23 = ssub.s32 %s18, 1
      %s24 = ssub.s32 %s18, 2
      %s31 = sadd.s32 1, %s26
      %p32 = scmp.ge.s32.totalorder %s31, 1
      %s33 = scalar_select %p32, 0, %s31
      %s34 = sadd.s32 1, %s25
      %s35 = scalar_select %p32, %s34, %s25
      %p36 = scmp.ge.s32.totalorder %s35, 2
      %s37 = scalar_select %p36, 0, %s35
      %s38 = ssub.s32 %s25, %s37
      %p39 = scmp.eq.s32.totalorder %s38, 0
      %s41 = sadd.s32 %s40, 1
      %s42 = scalar_select %p39, %s40, %s41
      %p45 = pneg %p39
      %p46 = scmp.eq.s32.totalorder %s18, 1
      %p47 = por %p45, %p46
      %p48 = scmp.ne.s32.totalorder %s40, %s43
      %p49 = scmp.eq.s32.totalorder %s18, 0
      %p50 = por %p48, %p49
      %p51 = scmp.ne.s32.totalorder %s40, %s43
      %p52 = scmp.eq.s32.totalorder %s23, 1
      %p53 = por %p51, %p52
      %p54 = scmp.ne.s32.totalorder %s43, %s44
      %p55 = scmp.eq.s32.totalorder %s23, 0
      %p56 = por %p54, %p55
      %p57 = scmp.ne.s32.totalorder %s43, %s44
      %p58 = scmp.eq.s32.totalorder %s24, 1
      %p59 = por %p57, %p58
      %p61 = scmp.ne.s32.totalorder %s44, %s60
      %p62 = scmp.eq.s32.totalorder %s24, 0
      %p63 = por %p61, %p62
      %s64 = ssub.s32 %s26, %s33
      %p65 = scmp.eq.s32.totalorder %s64, 0
      %s67 = sadd.s32 %s66, 1
      %s68 = scalar_select %p65, %s66, %s67
      %p71 = pneg %p65
      %p72 = scmp.eq.s32.totalorder %s18, 1
      %p73 = por %p71, %p72
      %p74 = scmp.ne.s32.totalorder %s66, %s69
      %p75 = scmp.eq.s32.totalorder %s18, 0
      %p76 = por %p74, %p75
      %p77 = scmp.ne.s32.totalorder %s66, %s69
      %p78 = scmp.eq.s32.totalorder %s23, 1
      %p79 = por %p77, %p78
      %p80 = scmp.ne.s32.totalorder %s69, %s70
      %p81 = scmp.eq.s32.totalorder %s23, 0
      %p82 = por %p80, %p81
      %p83 = scmp.ne.s32.totalorder %s69, %s70
      %p84 = scmp.eq.s32.totalorder %s24, 1
      %p85 = por %p83, %p84
      %p87 = scmp.ne.s32.totalorder %s70, %s86
      %p88 = scmp.eq.s32.totalorder %s24, 0
      %p89 = por %p87, %p88
      %s90 = ssub.s32 %s26, %s33
      %p91 = scmp.eq.s32.totalorder %s90, 0
      %s93 = sadd.s32 %s92, 1
      %s94 = scalar_select %p91, %s92, %s93
      %p97 = pneg %p91
      %p98 = scmp.eq.s32.totalorder %s18, 1
      %p99 = por %p97, %p98
      %p100 = scmp.ne.s32.totalorder %s92, %s95
      %p101 = scmp.eq.s32.totalorder %s18, 0
      %p102 = por %p100, %p101
      %p103 = scmp.ne.s32.totalorder %s92, %s95
      %p104 = scmp.eq.s32.totalorder %s23, 1
      %p105 = por %p103, %p104
      %p106 = scmp.ne.s32.totalorder %s95, %s96
      %p107 = scmp.eq.s32.totalorder %s23, 0
      %p108 = por %p106, %p107
      %p109 = scmp.ne.s32.totalorder %s95, %s96
      %p110 = scmp.eq.s32.totalorder %s24, 1
      %p111 = por %p109, %p110
      %p113 = scmp.ne.s32.totalorder %s96, %s112
      %p114 = scmp.eq.s32.totalorder %s24, 0
      %p115 = por %p113, %p114
      %s116 = ssub.s32 %s26, %s33
      %p117 = scmp.eq.s32.totalorder %s116, 0
      %s119 = sadd.s32 %s118, 1
      %s120 = scalar_select %p117, %s118, %s119
      %p123 = pneg %p117
      %p124 = scmp.eq.s32.totalorder %s18, 1
      %p125 = por %p123, %p124
      %p126 = scmp.ne.s32.totalorder %s118, %s121
      %p127 = scmp.eq.s32.totalorder %s18, 0
      %p128 = por %p126, %p127
      %p129 = scmp.ne.s32.totalorder %s118, %s121
      %p130 = scmp.eq.s32.totalorder %s23, 1
      %p131 = por %p129, %p130
      %p132 = scmp.ne.s32.totalorder %s121, %s122
      %p133 = scmp.eq.s32.totalorder %s23, 0
      %p134 = por %p132, %p133
      %p135 = scmp.ne.s32.totalorder %s121, %s122
      %p136 = scmp.eq.s32.totalorder %s24, 1
      %p137 = por %p135, %p136
      %p139 = scmp.ne.s32.totalorder %s122, %s138
      %p140 = scmp.eq.s32.totalorder %s24, 0
      %p141 = por %p139, %p140
      %s143 = sadd.s32 %s142, 1
      %p146 = scmp.eq.s32.totalorder %s18, 1
      %p147 = scmp.ne.s32.totalorder %s142, %s144
      %p148 = scmp.eq.s32.totalorder %s18, 0
      %p149 = por %p147, %p148
      %p150 = scmp.ne.s32.totalorder %s142, %s144
      %p151 = scmp.eq.s32.totalorder %s23, 1
      %p152 = por %p150, %p151
      %p153 = scmp.ne.s32.totalorder %s144, %s145
      %p154 = scmp.eq.s32.totalorder %s23, 0
      %p155 = por %p153, %p154
      %p156 = scmp.ne.s32.totalorder %s144, %s145
      %p157 = scmp.eq.s32.totalorder %s24, 1
      %p158 = por %p156, %p157
      %p160 = scmp.ne.s32.totalorder %s145, %s159
      %p161 = scmp.eq.s32.totalorder %s24, 0
      %p162 = por %p160, %p161
      %s163 = ssub.s32 %s25, %s37
      %p164 = scmp.eq.s32.totalorder %s163, 0
      %s166 = sadd.s32 %s165, 1
      %s167 = scalar_select %p164, %s165, %s166
      %p170 = pneg %p164
      %p171 = scmp.eq.s32.totalorder %s18, 1
      %p172 = por %p170, %p171
      %p173 = scmp.ne.s32.totalorder %s165, %s168
      %p174 = scmp.eq.s32.totalorder %s18, 0
      %p175 = por %p173, %p174
      %p176 = scmp.ne.s32.totalorder %s165, %s168
      %p177 = scmp.eq.s32.totalorder %s23, 1
      %p178 = por %p176, %p177
      %p179 = scmp.ne.s32.totalorder %s168, %s169
      %p180 = scmp.eq.s32.totalorder %s23, 0
      %p181 = por %p179, %p180
      %p182 = scmp.ne.s32.totalorder %s168, %s169
      %p183 = scmp.eq.s32.totalorder %s24, 1
      %p184 = por %p182, %p183
      %p186 = scmp.ne.s32.totalorder %s169, %s185
      %p187 = scmp.eq.s32.totalorder %s24, 0
      %p188 = por %p186, %p187
      %p189 = scmp.le.s32.totalorder 1, %s18
      %p190 = scmp.lt.s32.totalorder %s18, 3
      %p191 = pnand %p189, %p190
      %p192 = pneg %p191
      // Predicated region
      $region9: #{tpu_custom_call.1} parent=5 // pred_check
        _
      $region10: #{tpu_custom_call.1} parent=5 // pred_check_branch
        %194 = sbr.rel (%p191) target = $region12
      $region11: #{tpu_custom_call.1} parent=5 // pred_region
        %s195 = ssub.s32 %s18, 1
        // Predicated region
        $region13: #{tpu_custom_call.1} parent=11 // pred_check
          %p196 = pneg %p82
        $region14: #{tpu_custom_call.1} parent=11 // pred_check_branch
          %198 = sbr.rel (%p196) target = $region16
        $region15: #{tpu_custom_call.1} parent=11 // pred_region
          %s199 = smul.u32 2, %s28
          %s201 = ssub.s32 4096, 4096
          %202 = vsyncadd [#allocation7], %s201
          %s203 = smul.addr %s199, 128
          %s204 = scalar_lea.hbm %s1, %s203
          %s205 = sshll.u32 [#allocation6], 4
          %s206 = int_to_ptr.vmem [resolvable:$true] %s205
          %211 = dma.hbm_to_vmem [thread:$0]  %s204, 4096, %s206, [#allocation7], 256, 256, 16
        $region16: #{tpu_custom_call.1} parent=11 // pred_fallthru
          _
        // Predicated region
        $region17: #{tpu_custom_call.1} parent=11 // pred_check
          %p212 = pneg %p108
        $region18: #{tpu_custom_call.1} parent=11 // pred_check_branch
          %214 = sbr.rel (%p212) target = $region20
        $region19: #{tpu_custom_call.1} parent=11 // pred_region
          %s215 = smul.u32 2, %s28
          %p216 = scmp.lt.s32.totalorder %s215, 1
          %s217 = scalar_select %p216, %s215, 1
          %s218 = scalar_lea.vmem %s2, %s217
          %s219 = smul.u32 2, %s28
        $region20: #{tpu_custom_call.1} parent=11 // pred_fallthru
          _
        // Predicated region
        $region21: #{tpu_custom_call.1} parent=11 // pred_check
          %p220 = pneg %p134
        $region22: #{tpu_custom_call.1} parent=11 // pred_check_branch
          %222 = sbr.rel (%p220) target = $region24
        $region23: #{tpu_custom_call.1} parent=11 // pred_region
          %s223 = smul.u32 32, %s28
          %s225 = ssub.s32 4096, 4096
          %226 = vsyncadd [#allocation7], %s225
          %s227 = smul.addr %s223, 128
          %s228 = scalar_lea.hbm %s3, %s227
          %s229 = sshll.u32 [#allocation8], 4
          %s230 = int_to_ptr.vmem [resolvable:$true] %s229
          %235 = dma.hbm_to_vmem [thread:$0]  %s228, 4096, %s230, [#allocation7], 128, 128, 8
        $region24: #{tpu_custom_call.1} parent=11 // pred_fallthru
          _
        // Predicated region
        $region25: #{tpu_custom_call.1} parent=11 // pred_check
          %p236 = pneg %p155
        $region26: #{tpu_custom_call.1} parent=11 // pred_check_branch
          %238 = sbr.rel (%p236) target = $region28
        $region27: #{tpu_custom_call.1} parent=11 // pred_region
          _
        $region28: #{tpu_custom_call.1} parent=11 // pred_fallthru
          _
      $region12: #{tpu_custom_call.1} parent=5 // pred_fallthru
        _
      %p239 = scmp.lt.s32.totalorder %s18, 2
      // Predicated region
      $region29: #{tpu_custom_call.1} parent=5 // pred_check
        %p240 = pneg %p239
      $region30: #{tpu_custom_call.1} parent=5 // pred_check_branch
        %242 = sbr.rel (%p240) target = $region32
      $region31: #{tpu_custom_call.1} parent=5 // pred_region
        // Predicated region
        $region33: #{tpu_custom_call.1} parent=31 // pred_check
          %p243 = pneg %p50
        $region34: #{tpu_custom_call.1} parent=31 // pred_check_branch
          %245 = sbr.rel (%p243) target = $region36
        $region35: #{tpu_custom_call.1} parent=31 // pred_region
          %s246 = sand.u32 %s40, 1
          %s247 = scalar_lea.sflag [#allocation4], %s246
          %s248 = sand.u32 %s40, 1
          %s249 = smul.addr %s248, 256
          %s250 = scalar_lea.vmem [#allocation3], %s249
          %s251 = smul.u32 32, %s25
          %s253 = ssub.s32 4096, 4096
          %254 = vsyncadd %s247, %s253
          %s255 = smul.addr %s251, 128
          %s256 = scalar_lea.hbm %s0, %s255
          %s257 = sshll.u32 %s250, 4
          %s258 = int_to_ptr.vmem [resolvable:$true] %s257
          %263 = dma.hbm_to_vmem [thread:$0]  %s256, 4096, %s258, %s247, 128, 128, 8
        $region36: #{tpu_custom_call.1} parent=31 // pred_fallthru
          _
      $region32: #{tpu_custom_call.1} parent=5 // pred_fallthru
        _
      %p264 = scmp.le.s32.totalorder 1, %s18
      %p265 = scmp.lt.s32.totalorder %s18, 3
      %p266 = pnand %p264, %p265
      %p267 = pneg %p266
      // Predicated region
      $region37: #{tpu_custom_call.1} parent=5 // pred_check
        _
      $region38: #{tpu_custom_call.1} parent=5 // pred_check_branch
        %269 = sbr.rel (%p266) target = $region40
      $region39: #{tpu_custom_call.1} parent=5 // pred_region
        %s270 = ssub.s32 %s18, 1
        %s271 = sand.u32 %s43, 1
        %s272 = scalar_lea.sflag [#allocation4], %s271
        %s273 = sand.u32 %s43, 1
        %s274 = smul.addr %s273, 256
        %s275 = scalar_lea.vmem [#allocation3], %s274
        // Predicated region
        $region41: #{tpu_custom_call.1} parent=39 // pred_check
          %p276 = pneg %p56
        $region42: #{tpu_custom_call.1} parent=39 // pred_check_branch
          %278 = sbr.rel (%p276) target = $region44
        $region43: #{tpu_custom_call.1} parent=39 // pred_region
          %279 = dma.done %s272, 4096
        $region44: #{tpu_custom_call.1} parent=39 // pred_fallthru
          _
        // Predicated region
        $region45: #{tpu_custom_call.1} parent=39 // pred_check
          %p280 = pneg %p82
        $region46: #{tpu_custom_call.1} parent=39 // pred_check_branch
          %282 = sbr.rel (%p280) target = $region48
        $region47: #{tpu_custom_call.1} parent=39 // pred_region
          %283 = dma.done [#allocation7], 4096
        $region48: #{tpu_custom_call.1} parent=39 // pred_fallthru
          _
        // Predicated region
        $region49: #{tpu_custom_call.1} parent=39 // pred_check
          %p284 = pneg %p134
        $region50: #{tpu_custom_call.1} parent=39 // pred_check_branch
          %286 = sbr.rel (%p284) target = $region52
        $region51: #{tpu_custom_call.1} parent=39 // pred_region
          %287 = dma.done [#allocation7], 4096
        $region52: #{tpu_custom_call.1} parent=39 // pred_fallthru
          _
        %s288 = sand.u32 %s43, 1
        %s289 = scalar_lea.sflag [#allocation4], %s288
        %s290 = sand.u32 %s43, 1
        %s291 = smul.addr %s290, 256
        %s292 = scalar_lea.vmem [#allocation3], %s291
        %p293 = pneg %p56
        %p294 = pneg %p53
        %p295 = pneg %p82
        %p296 = pneg %p79
        %s297 = smul.u32 2, %s28
        %p298 = scmp.lt.s32.totalorder %s297, 1
        %s299 = scalar_select %p298, %s297, 1
        %s300 = scalar_lea.vmem %s2, %s299
        %p301 = pneg %p108
        %p302 = pneg %p105
        %p303 = pneg %p134
        %p304 = pneg %p131
        %p305 = pneg %p155
        %p306 = pneg %p152
        %p307 = pneg %p181
        %p308 = pneg %p178
        %s309 = sand.u32 %s168, 1
        %s310 = scalar_lea.sflag [#allocation5], %s309
        %s311 = sand.u32 %s168, 1
        %s312 = smul.addr %s311, 256
        %s313 = scalar_lea.vmem [#allocation9], %s312
        %s314 = smul.u32 32, %s27
        %s315 = smul.u32 2, %s28
        %s316 = smul.u32 2, %s28
        %p317 = scmp.lt.s32.totalorder %s316, 1
        %s318 = scalar_select %p317, %s316, 1
        %s319 = scalar_lea.vmem %s2, %s318
        %s320 = smul.u32 2, %s28
        %s321 = smul.u32 32, %s28
        %s322 = smul.u32 32, %s27
        %p323 = scmp.eq.s32.totalorder %s28, 0
        // Predicated region
        $region53: #{tpu_custom_call.1} parent=39 // pred_check
          %p324 = pneg %p323
        $region54: #{tpu_custom_call.1} parent=39 // pred_check_branch
          %326 = sbr.rel (%p324) target = $region56
        $region55: #{tpu_custom_call.1} parent=39 // pred_region
          %327 = vst [vmem:[#allocation2] sm:$0xff] 0.0
          %328 = vst [vmem:[#allocation2 + $0x8] sm:$0xff] 0.0
          %329 = vst [vmem:[#allocation2 + $0x10] sm:$0xff] 0.0
          %330 = vst [vmem:[#allocation2 + $0x18] sm:$0xff] 0.0
          %331 = vst [vmem:[#allocation2 + $0x20] sm:$0xff] 0.0
          %332 = vst [vmem:[#allocation2 + $0x28] sm:$0xff] 0.0
          %333 = vst [vmem:[#allocation2 + $0x30] sm:$0xff] 0.0
          %334 = vst [vmem:[#allocation2 + $0x38] sm:$0xff] 0.0
          %335 = vst [vmem:[#allocation2 + $0x40] sm:$0xff] 0.0
          %336 = vst [vmem:[#allocation2 + $0x48] sm:$0xff] 0.0
          %337 = vst [vmem:[#allocation2 + $0x50] sm:$0xff] 0.0
          %338 = vst [vmem:[#allocation2 + $0x58] sm:$0xff] 0.0
          %339 = vst [vmem:[#allocation2 + $0x60] sm:$0xff] 0.0
          %340 = vst [vmem:[#allocation2 + $0x68] sm:$0xff] 0.0
          %341 = vst [vmem:[#allocation2 + $0x70] sm:$0xff] 0.0
          %342 = vst [vmem:[#allocation2 + $0x78] sm:$0xff] 0.0
          %343 = vst [vmem:[#allocation2 + $0x80] sm:$0xff] 0.0
          %344 = vst [vmem:[#allocation2 + $0x88] sm:$0xff] 0.0
          %345 = vst [vmem:[#allocation2 + $0x90] sm:$0xff] 0.0
          %346 = vst [vmem:[#allocation2 + $0x98] sm:$0xff] 0.0
          %347 = vst [vmem:[#allocation2 + $0xa0] sm:$0xff] 0.0
          %348 = vst [vmem:[#allocation2 + $0xa8] sm:$0xff] 0.0
          %349 = vst [vmem:[#allocation2 + $0xb0] sm:$0xff] 0.0
          %350 = vst [vmem:[#allocation2 + $0xb8] sm:$0xff] 0.0
          %351 = vst [vmem:[#allocation2 + $0xc0] sm:$0xff] 0.0
          %352 = vst [vmem:[#allocation2 + $0xc8] sm:$0xff] 0.0
          %353 = vst [vmem:[#allocation2 + $0xd0] sm:$0xff] 0.0
          %354 = vst [vmem:[#allocation2 + $0xd8] sm:$0xff] 0.0
          %355 = vst [vmem:[#allocation2 + $0xe0] sm:$0xff] 0.0
          %356 = vst [vmem:[#allocation2 + $0xe8] sm:$0xff] 0.0
          %357 = vst [vmem:[#allocation2 + $0xf0] sm:$0xff] 0.0
          %358 = vst [vmem:[#allocation2 + $0xf8] sm:$0xff] 0.0
        $region56: #{tpu_custom_call.1} parent=39 // pred_fallthru
          _
        %v359 = vld [vmem:[%s275] sm:$0xff]
        %v360 = vld [vmem:[%s275 + $0x8] sm:$0xff]
        %v361 = vld [vmem:[%s275 + $0x10] sm:$0xff]
        %v362 = vld [vmem:[%s275 + $0x18] sm:$0xff]
        %v363 = vld [vmem:[%s275 + $0x20] sm:$0xff]
        %v364 = vld [vmem:[%s275 + $0x28] sm:$0xff]
        %v365 = vld [vmem:[%s275 + $0x30] sm:$0xff]
        %v366 = vld [vmem:[%s275 + $0x38] sm:$0xff]
        %v367 = vld [vmem:[%s275 + $0x40] sm:$0xff]
        %v368 = vld [vmem:[%s275 + $0x48] sm:$0xff]
        %v369 = vld [vmem:[%s275 + $0x50] sm:$0xff]
        %v370 = vld [vmem:[%s275 + $0x58] sm:$0xff]
        %v371 = vld [vmem:[%s275 + $0x60] sm:$0xff]
        %v372 = vld [vmem:[%s275 + $0x68] sm:$0xff]
        %v373 = vld [vmem:[%s275 + $0x70] sm:$0xff]
        %v374 = vld [vmem:[%s275 + $0x78] sm:$0xff]
        %v375 = vld [vmem:[%s275 + $0x80] sm:$0xff]
        %v376 = vld [vmem:[%s275 + $0x88] sm:$0xff]
        %v377 = vld [vmem:[%s275 + $0x90] sm:$0xff]
        %v378 = vld [vmem:[%s275 + $0x98] sm:$0xff]
        %v379 = vld [vmem:[%s275 + $0xa0] sm:$0xff]
        %v380 = vld [vmem:[%s275 + $0xa8] sm:$0xff]
        %v381 = vld [vmem:[%s275 + $0xb0] sm:$0xff]
        %v382 = vld [vmem:[%s275 + $0xb8] sm:$0xff]
        %v383 = vld [vmem:[%s275 + $0xc0] sm:$0xff]
        %v384 = vld [vmem:[%s275 + $0xc8] sm:$0xff]
        %v385 = vld [vmem:[%s275 + $0xd0] sm:$0xff]
        %v386 = vld [vmem:[%s275 + $0xd8] sm:$0xff]
        %v387 = vld [vmem:[%s275 + $0xe0] sm:$0xff]
        %v388 = vld [vmem:[%s275 + $0xe8] sm:$0xff]
        %v389 = vld [vmem:[%s275 + $0xf0] sm:$0xff]
        %v390 = vld [vmem:[%s275 + $0xf8] sm:$0xff]
        %v391 = vld [vmem:[#allocation6] sm:$0xff]
        %v392 = vld [vmem:[#allocation6 + $0x8] sm:$0xff]
        %v393 = vld [vmem:[#allocation6 + $0x10] sm:$0xff]
        %v394 = vld [vmem:[#allocation6 + $0x18] sm:$0xff]
        %v395 = vld [vmem:[#allocation6 + $0x20] sm:$0xff]
        %v396 = vld [vmem:[#allocation6 + $0x28] sm:$0xff]
        %v397 = vld [vmem:[#allocation6 + $0x30] sm:$0xff]
        %v398 = vld [vmem:[#allocation6 + $0x38] sm:$0xff]
        %v399 = vld [vmem:[#allocation6 + $0x40] sm:$0xff]
        %v400 = vld [vmem:[#allocation6 + $0x48] sm:$0xff]
        %v401 = vld [vmem:[#allocation6 + $0x50] sm:$0xff]
        %v402 = vld [vmem:[#allocation6 + $0x58] sm:$0xff]
        %v403 = vld [vmem:[#allocation6 + $0x60] sm:$0xff]
        %v404 = vld [vmem:[#allocation6 + $0x68] sm:$0xff]
        %v405 = vld [vmem:[#allocation6 + $0x70] sm:$0xff]
        %v406 = vld [vmem:[#allocation6 + $0x78] sm:$0xff]
        %v407 = vld [vmem:[#allocation6 + $0x80] sm:$0xff]
        %v408 = vld [vmem:[#allocation6 + $0x88] sm:$0xff]
        %v409 = vld [vmem:[#allocation6 + $0x90] sm:$0xff]
        %v410 = vld [vmem:[#allocation6 + $0x98] sm:$0xff]
        %v411 = vld [vmem:[#allocation6 + $0xa0] sm:$0xff]
        %v412 = vld [vmem:[#allocation6 + $0xa8] sm:$0xff]
        %v413 = vld [vmem:[#allocation6 + $0xb0] sm:$0xff]
        %v414 = vld [vmem:[#allocation6 + $0xb8] sm:$0xff]
        %v415 = vld [vmem:[#allocation6 + $0xc0] sm:$0xff]
        %v416 = vld [vmem:[#allocation6 + $0xc8] sm:$0xff]
        %v417 = vld [vmem:[#allocation6 + $0xd0] sm:$0xff]
        %v418 = vld [vmem:[#allocation6 + $0xd8] sm:$0xff]
        %v419 = vld [vmem:[#allocation6 + $0xe0] sm:$0xff]
        %v420 = vld [vmem:[#allocation6 + $0xe8] sm:$0xff]
        %v421 = vld [vmem:[#allocation6 + $0xf0] sm:$0xff]
        %v422 = vld [vmem:[#allocation6 + $0xf8] sm:$0xff]
        %v423 = vld [vmem:[%s319] sm:$0x3]
        %v425 = vlaneseq
        %v426 = vshrl.u32 %v425, 7
        %v427 = vsub.s32 0, %v426
        %v428 = vrot.slane %v423, %v427
        %v429 = vlaneseq
        %v430 = vshrl.u32 %v429, 7
        %v431 = vsub.s32 1, %v430
        %v432 = vrot.slane %v423, %v431
        %435 = vmatprep.subr.mxu0 %v422
        %436 = vmatpush1.msra.mxu0 %v421
        %437 = vmatprep.subr.mxu0 %v420
        %438 = vmatpush1.msra.mxu0 %v419
        %439 = vmatprep.subr.mxu0 %v418
        %440 = vmatpush1.msra.mxu0 %v417
        %441 = vmatprep.subr.mxu0 %v416
        %442 = vmatpush1.msra.mxu0 %v415
        %443 = vmatprep.subr.mxu0 %v414
        %444 = vmatpush1.msra.mxu0 %v413
        %445 = vmatprep.subr.mxu0 %v412
        %446 = vmatpush1.msra.mxu0 %v411
        %447 = vmatprep.subr.mxu0 %v410
        %448 = vmatpush1.msra.mxu0 %v409
        %449 = vmatprep.subr.mxu0 %v408
        %450 = vmatpush1.msra.mxu0 %v407
        %451 = vmatprep.subr.mxu0 %v406
        %452 = vmatpush1.msra.mxu0 %v405
        %453 = vmatprep.subr.mxu0 %v404
        %454 = vmatpush1.msra.mxu0 %v403
        %455 = vmatprep.subr.mxu0 %v402
        %456 = vmatpush1.msra.mxu0 %v401
        %457 = vmatprep.subr.mxu0 %v400
        %458 = vmatpush1.msra.mxu0 %v399
        %459 = vmatprep.subr.mxu0 %v398
        %460 = vmatpush1.msra.mxu0 %v397
        %461 = vmatprep.subr.mxu0 %v396
        %462 = vmatpush1.msra.mxu0 %v395
        %463 = vmatprep.subr.mxu0 %v394
        %464 = vmatpush1.msra.mxu0 %v393
        %465 = vmatprep.subr.mxu0 %v392
        %466 = vmatpush1.msra.mxu0 %v391
        %467 = vmatprep.subr.mxu0 0.0
        %468 = vmatpush2.msra.mxu0 0.0
        %469 = vmatprep.subr.mxu0 0.0
        %470 = vmatpush2.msra.mxu0 0.0
        %471 = vmatprep.subr.mxu0 0.0
        %472 = vmatpush2.msra.mxu0 0.0
        %473 = vmatprep.subr.mxu0 0.0
        %474 = vmatpush2.msra.mxu0 0.0
        %475 = vmatprep.subr.mxu0 0.0
        %476 = vmatpush2.msra.mxu0 0.0
        %477 = vmatprep.subr.mxu0 0.0
        %478 = vmatpush2.msra.mxu0 0.0
        %479 = vmatprep.subr.mxu0 0.0
        %480 = vmatpush2.msra.mxu0 0.0
        %481 = vmatprep.subr.mxu0 0.0
        %482 = vmatpush2.msra.mxu0 0.0
        %483 = vmatprep.subr.mxu0 0.0
        %484 = vmatpush2.msra.mxu0 0.0
        %485 = vmatprep.subr.mxu0 0.0
        %486 = vmatpush2.msra.mxu0 0.0
        %487 = vmatprep.subr.mxu0 0.0
        %488 = vmatpush2.msra.mxu0 0.0
        %489 = vmatprep.subr.mxu0 0.0
        %490 = vmatpush2.msra.mxu0 0.0
        %491 = vmatprep.subr.mxu0 0.0
        %492 = vmatpush2.msra.mxu0 0.0
        %493 = vmatprep.subr.mxu0 0.0
        %494 = vmatpush2.msra.mxu0 0.0
        %495 = vmatprep.subr.mxu0 0.0
        %496 = vmatpush2.msra.mxu0 0.0
        %497 = vmatprep.subr.mxu0 0.0
        %498 = vmatpush2.msra.mxu0 0.0
        %499 = vmatprep.mubr.f32.mxu0 0.0
        %500 = vmatmul.mubr.f32.gmra.mxu0 %v359
        %v501 = vpop.f32.mrf.mxu0
        %v502 = vadd.f32 %v428, %v501
        %v503 = vpop.f32.mrf.mxu0
        %v504 = vadd.f32 %v432, %v503
        %505 = vmatprep.mubr.f32.mxu0 0.0
        %506 = vmatmul.mubr.f32.gmra.mxu0 %v360
        %v507 = vpop.f32.mrf.mxu0
        %v508 = vadd.f32 %v428, %v507
        %v509 = vpop.f32.mrf.mxu0
        %v510 = vadd.f32 %v432, %v509
        %511 = vmatprep.mubr.f32.mxu0 0.0
        %512 = vmatmul.mubr.f32.gmra.mxu0 %v361
        %v513 = vpop.f32.mrf.mxu0
        %v514 = vadd.f32 %v428, %v513
        %v515 = vpop.f32.mrf.mxu0
        %v516 = vadd.f32 %v432, %v515
        %517 = vmatprep.mubr.f32.mxu0 0.0
        %518 = vmatmul.mubr.f32.gmra.mxu0 %v362
        %v519 = vpop.f32.mrf.mxu0
        %v520 = vadd.f32 %v428, %v519
        %v521 = vpop.f32.mrf.mxu0
        %v522 = vadd.f32 %v432, %v521
        %523 = vmatprep.mubr.f32.mxu0 0.0
        %524 = vmatmul.mubr.f32.gmra.mxu0 %v363
        %v525 = vpop.f32.mrf.mxu0
        %v526 = vadd.f32 %v428, %v525
        %v527 = vpop.f32.mrf.mxu0
        %v528 = vadd.f32 %v432, %v527
        %529 = vmatprep.mubr.f32.mxu0 0.0
        %530 = vmatmul.mubr.f32.gmra.mxu0 %v364
        %v531 = vpop.f32.mrf.mxu0
        %v532 = vadd.f32 %v428, %v531
        %v533 = vpop.f32.mrf.mxu0
        %v534 = vadd.f32 %v432, %v533
        %535 = vmatprep.mubr.f32.mxu0 0.0
        %536 = vmatmul.mubr.f32.gmra.mxu0 %v365
        %v537 = vpop.f32.mrf.mxu0
        %v538 = vadd.f32 %v428, %v537
        %v539 = vpop.f32.mrf.mxu0
        %v540 = vadd.f32 %v432, %v539
        %541 = vmatprep.mubr.f32.mxu0 0.0
        %542 = vmatmul.mubr.f32.gmra.mxu0 %v366
        %v543 = vpop.f32.mrf.mxu0
        %v544 = vadd.f32 %v428, %v543
        %v545 = vpop.f32.mrf.mxu0
        %v546 = vadd.f32 %v432, %v545
        %547 = vmatprep.mubr.f32.mxu0 0.0
        %548 = vmatmul.mubr.f32.gmra.mxu0 %v367
        %v549 = vpop.f32.mrf.mxu0
        %v550 = vadd.f32 %v428, %v549
        %v551 = vpop.f32.mrf.mxu0
        %v552 = vadd.f32 %v432, %v551
        %553 = vmatprep.mubr.f32.mxu0 0.0
        %554 = vmatmul.mubr.f32.gmra.mxu0 %v368
        %v555 = vpop.f32.mrf.mxu0
        %v556 = vadd.f32 %v428, %v555
        %v557 = vpop.f32.mrf.mxu0
        %v558 = vadd.f32 %v432, %v557
        %559 = vmatprep.mubr.f32.mxu0 0.0
        %560 = vmatmul.mubr.f32.gmra.mxu0 %v369
        %v561 = vpop.f32.mrf.mxu0
        %v562 = vadd.f32 %v428, %v561
        %v563 = vpop.f32.mrf.mxu0
        %v564 = vadd.f32 %v432, %v563
        %565 = vmatprep.mubr.f32.mxu0 0.0
        %566 = vmatmul.mubr.f32.gmra.mxu0 %v370
        %v567 = vpop.f32.mrf.mxu0
        %v568 = vadd.f32 %v428, %v567
        %v569 = vpop.f32.mrf.mxu0
        %v570 = vadd.f32 %v432, %v569
        %571 = vmatprep.mubr.f32.mxu0 0.0
        %572 = vmatmul.mubr.f32.gmra.mxu0 %v371
        %v573 = vpop.f32.mrf.mxu0
        %v574 = vadd.f32 %v428, %v573
        %v575 = vpop.f32.mrf.mxu0
        %v576 = vadd.f32 %v432, %v575
        %577 = vmatprep.mubr.f32.mxu0 0.0
        %578 = vmatmul.mubr.f32.gmra.mxu0 %v372
        %v579 = vpop.f32.mrf.mxu0
        %v580 = vadd.f32 %v428, %v579
        %v581 = vpop.f32.mrf.mxu0
        %v582 = vadd.f32 %v432, %v581
        %583 = vmatprep.mubr.f32.mxu0 0.0
        %584 = vmatmul.mubr.f32.gmra.mxu0 %v373
        %v585 = vpop.f32.mrf.mxu0
        %v586 = vadd.f32 %v428, %v585
        %v587 = vpop.f32.mrf.mxu0
        %v588 = vadd.f32 %v432, %v587
        %589 = vmatprep.mubr.f32.mxu0 0.0
        %590 = vmatmul.mubr.f32.gmra.mxu0 %v374
        %v591 = vpop.f32.mrf.mxu0
        %v592 = vadd.f32 %v428, %v591
        %v593 = vpop.f32.mrf.mxu0
        %v594 = vadd.f32 %v432, %v593
        %595 = vmatprep.mubr.f32.mxu0 0.0
        %596 = vmatmul.mubr.f32.gmra.mxu0 %v375
        %v597 = vpop.f32.mrf.mxu0
        %v598 = vadd.f32 %v428, %v597
        %v599 = vpop.f32.mrf.mxu0
        %v600 = vadd.f32 %v432, %v599
        %601 = vmatprep.mubr.f32.mxu0 0.0
        %602 = vmatmul.mubr.f32.gmra.mxu0 %v376
        %v603 = vpop.f32.mrf.mxu0
        %v604 = vadd.f32 %v428, %v603
        %v605 = vpop.f32.mrf.mxu0
        %v606 = vadd.f32 %v432, %v605
        %607 = vmatprep.mubr.f32.mxu0 0.0
        %608 = vmatmul.mubr.f32.gmra.mxu0 %v377
        %v609 = vpop.f32.mrf.mxu0
        %v610 = vadd.f32 %v428, %v609
        %v611 = vpop.f32.mrf.mxu0
        %v612 = vadd.f32 %v432, %v611
        %613 = vmatprep.mubr.f32.mxu0 0.0
        %614 = vmatmul.mubr.f32.gmra.mxu0 %v378
        %v615 = vpop.f32.mrf.mxu0
        %v616 = vadd.f32 %v428, %v615
        %v617 = vpop.f32.mrf.mxu0
        %v618 = vadd.f32 %v432, %v617
        %619 = vmatprep.mubr.f32.mxu0 0.0
        %620 = vmatmul.mubr.f32.gmra.mxu0 %v379
        %v621 = vpop.f32.mrf.mxu0
        %v622 = vadd.f32 %v428, %v621
        %v623 = vpop.f32.mrf.mxu0
        %v624 = vadd.f32 %v432, %v623
        %625 = vmatprep.mubr.f32.mxu0 0.0
        %626 = vmatmul.mubr.f32.gmra.mxu0 %v380
        %v627 = vpop.f32.mrf.mxu0
        %v628 = vadd.f32 %v428, %v627
        %v629 = vpop.f32.mrf.mxu0
        %v630 = vadd.f32 %v432, %v629
        %631 = vmatprep.mubr.f32.mxu0 0.0
        %632 = vmatmul.mubr.f32.gmra.mxu0 %v381
        %v633 = vpop.f32.mrf.mxu0
        %v634 = vadd.f32 %v428, %v633
        %v635 = vpop.f32.mrf.mxu0
        %v636 = vadd.f32 %v432, %v635
        %637 = vmatprep.mubr.f32.mxu0 0.0
        %638 = vmatmul.mubr.f32.gmra.mxu0 %v382
        %v639 = vpop.f32.mrf.mxu0
        %v640 = vadd.f32 %v428, %v639
        %v641 = vpop.f32.mrf.mxu0
        %v642 = vadd.f32 %v432, %v641
        %643 = vmatprep.mubr.f32.mxu0 0.0
        %644 = vmatmul.mubr.f32.gmra.mxu0 %v383
        %v645 = vpop.f32.mrf.mxu0
        %v646 = vadd.f32 %v428, %v645
        %v647 = vpop.f32.mrf.mxu0
        %v648 = vadd.f32 %v432, %v647
        %649 = vmatprep.mubr.f32.mxu0 0.0
        %650 = vmatmul.mubr.f32.gmra.mxu0 %v384
        %v651 = vpop.f32.mrf.mxu0
        %v652 = vadd.f32 %v428, %v651
        %v653 = vpop.f32.mrf.mxu0
        %v654 = vadd.f32 %v432, %v653
        %655 = vmatprep.mubr.f32.mxu0 0.0
        %656 = vmatmul.mubr.f32.gmra.mxu0 %v385
        %v657 = vpop.f32.mrf.mxu0
        %v658 = vadd.f32 %v428, %v657
        %v659 = vpop.f32.mrf.mxu0
        %v660 = vadd.f32 %v432, %v659
        %661 = vmatprep.mubr.f32.mxu0 0.0
        %662 = vmatmul.mubr.f32.gmra.mxu0 %v386
        %v663 = vpop.f32.mrf.mxu0
        %v664 = vadd.f32 %v428, %v663
        %v665 = vpop.f32.mrf.mxu0
        %v666 = vadd.f32 %v432, %v665
        %667 = vmatprep.mubr.f32.mxu0 0.0
        %668 = vmatmul.mubr.f32.gmra.mxu0 %v387
        %v669 = vpop.f32.mrf.mxu0
        %v670 = vadd.f32 %v428, %v669
        %v671 = vpop.f32.mrf.mxu0
        %v672 = vadd.f32 %v432, %v671
        %673 = vmatprep.mubr.f32.mxu0 0.0
        %674 = vmatmul.mubr.f32.gmra.mxu0 %v388
        %v675 = vpop.f32.mrf.mxu0
        %v676 = vadd.f32 %v428, %v675
        %v677 = vpop.f32.mrf.mxu0
        %v678 = vadd.f32 %v432, %v677
        %679 = vmatprep.mubr.f32.mxu0 0.0
        %680 = vmatmul.mubr.f32.gmra.mxu0 %v389
        %v681 = vpop.f32.mrf.mxu0
        %v682 = vadd.f32 %v428, %v681
        %v683 = vpop.f32.mrf.mxu0
        %v684 = vadd.f32 %v432, %v683
        %685 = vmatprep.mubr.f32.mxu0 0.0
        %686 = vmatmul.mubr.f32.gmra.mxu0 %v390
        %v687 = vpop.f32.mrf.mxu0
        %v688 = vadd.f32 %v428, %v687
        %v689 = vpop.f32.mrf.mxu0
        %v690 = vadd.f32 %v432, %v689
        %691 = vdwg.mxu0
        %v692 = vmax.f32 %v502, 0.0
        %v693 = vmax.f32 %v504, 0.0
        %v694 = vmax.f32 %v508, 0.0
        %v695 = vmax.f32 %v510, 0.0
        %v696 = vmax.f32 %v514, 0.0
        %v697 = vmax.f32 %v516, 0.0
        %v698 = vmax.f32 %v520, 0.0
        %v699 = vmax.f32 %v522, 0.0
        %v700 = vmax.f32 %v526, 0.0
        %v701 = vmax.f32 %v528, 0.0
        %v702 = vmax.f32 %v532, 0.0
        %v703 = vmax.f32 %v534, 0.0
        %v704 = vmax.f32 %v538, 0.0
        %v705 = vmax.f32 %v540, 0.0
        %v706 = vmax.f32 %v544, 0.0
        %v707 = vmax.f32 %v546, 0.0
        %v708 = vmax.f32 %v550, 0.0
        %v709 = vmax.f32 %v552, 0.0
        %v710 = vmax.f32 %v556, 0.0
        %v711 = vmax.f32 %v558, 0.0
        %v712 = vmax.f32 %v562, 0.0
        %v713 = vmax.f32 %v564, 0.0
        %v714 = vmax.f32 %v568, 0.0
        %v715 = vmax.f32 %v570, 0.0
        %v716 = vmax.f32 %v574, 0.0
        %v717 = vmax.f32 %v576, 0.0
        %v718 = vmax.f32 %v580, 0.0
        %v719 = vmax.f32 %v582, 0.0
        %v720 = vmax.f32 %v586, 0.0
        %v721 = vmax.f32 %v588, 0.0
        %v722 = vmax.f32 %v592, 0.0
        %v723 = vmax.f32 %v594, 0.0
        %v724 = vmax.f32 %v598, 0.0
        %v725 = vmax.f32 %v600, 0.0
        %v726 = vmax.f32 %v604, 0.0
        %v727 = vmax.f32 %v606, 0.0
        %v728 = vmax.f32 %v610, 0.0
        %v729 = vmax.f32 %v612, 0.0
        %v730 = vmax.f32 %v616, 0.0
        %v731 = vmax.f32 %v618, 0.0
        %v732 = vmax.f32 %v622, 0.0
        %v733 = vmax.f32 %v624, 0.0
        %v734 = vmax.f32 %v628, 0.0
        %v735 = vmax.f32 %v630, 0.0
        %v736 = vmax.f32 %v634, 0.0
        %v737 = vmax.f32 %v636, 0.0
        %v738 = vmax.f32 %v640, 0.0
        %v739 = vmax.f32 %v642, 0.0
        %v740 = vmax.f32 %v646, 0.0
        %v741 = vmax.f32 %v648, 0.0
        %v742 = vmax.f32 %v652, 0.0
        %v743 = vmax.f32 %v654, 0.0
        %v744 = vmax.f32 %v658, 0.0
        %v745 = vmax.f32 %v660, 0.0
        %v746 = vmax.f32 %v664, 0.0
        %v747 = vmax.f32 %v666, 0.0
        %v748 = vmax.f32 %v670, 0.0
        %v749 = vmax.f32 %v672, 0.0
        %v750 = vmax.f32 %v676, 0.0
        %v751 = vmax.f32 %v678, 0.0
        %v752 = vmax.f32 %v682, 0.0
        %v753 = vmax.f32 %v684, 0.0
        %v754 = vmax.f32 %v688, 0.0
        %v755 = vmax.f32 %v690, 0.0
        %v756 = vld [vmem:[#allocation2] sm:$0xff]
        %v757 = vld [vmem:[#allocation2 + $0x8] sm:$0xff]
        %v758 = vld [vmem:[#allocation2 + $0x10] sm:$0xff]
        %v759 = vld [vmem:[#allocation2 + $0x18] sm:$0xff]
        %v760 = vld [vmem:[#allocation2 + $0x20] sm:$0xff]
        %v761 = vld [vmem:[#allocation2 + $0x28] sm:$0xff]
        %v762 = vld [vmem:[#allocation2 + $0x30] sm:$0xff]
        %v763 = vld [vmem:[#allocation2 + $0x38] sm:$0xff]
        %v764 = vld [vmem:[#allocation2 + $0x40] sm:$0xff]
        %v765 = vld [vmem:[#allocation2 + $0x48] sm:$0xff]
        %v766 = vld [vmem:[#allocation2 + $0x50] sm:$0xff]
        %v767 = vld [vmem:[#allocation2 + $0x58] sm:$0xff]
        %v768 = vld [vmem:[#allocation2 + $0x60] sm:$0xff]
        %v769 = vld [vmem:[#allocation2 + $0x68] sm:$0xff]
        %v770 = vld [vmem:[#allocation2 + $0x70] sm:$0xff]
        %v771 = vld [vmem:[#allocation2 + $0x78] sm:$0xff]
        %v772 = vld [vmem:[#allocation2 + $0x80] sm:$0xff]
        %v773 = vld [vmem:[#allocation2 + $0x88] sm:$0xff]
        %v774 = vld [vmem:[#allocation2 + $0x90] sm:$0xff]
        %v775 = vld [vmem:[#allocation2 + $0x98] sm:$0xff]
        %v776 = vld [vmem:[#allocation2 + $0xa0] sm:$0xff]
        %v777 = vld [vmem:[#allocation2 + $0xa8] sm:$0xff]
        %v778 = vld [vmem:[#allocation2 + $0xb0] sm:$0xff]
        %v779 = vld [vmem:[#allocation2 + $0xb8] sm:$0xff]
        %v780 = vld [vmem:[#allocation2 + $0xc0] sm:$0xff]
        %v781 = vld [vmem:[#allocation2 + $0xc8] sm:$0xff]
        %v782 = vld [vmem:[#allocation2 + $0xd0] sm:$0xff]
        %v783 = vld [vmem:[#allocation2 + $0xd8] sm:$0xff]
        %v784 = vld [vmem:[#allocation2 + $0xe0] sm:$0xff]
        %v785 = vld [vmem:[#allocation2 + $0xe8] sm:$0xff]
        %v786 = vld [vmem:[#allocation2 + $0xf0] sm:$0xff]
        %v787 = vld [vmem:[#allocation2 + $0xf8] sm:$0xff]
        %v788 = vld [vmem:[#allocation8] sm:$0xff]
        %v789 = vld [vmem:[#allocation8 + $0x8] sm:$0xff]
        %v790 = vld [vmem:[#allocation8 + $0x10] sm:$0xff]
        %v791 = vld [vmem:[#allocation8 + $0x18] sm:$0xff]
        %v792 = vld [vmem:[#allocation8 + $0x20] sm:$0xff]
        %v793 = vld [vmem:[#allocation8 + $0x28] sm:$0xff]
        %v794 = vld [vmem:[#allocation8 + $0x30] sm:$0xff]
        %v795 = vld [vmem:[#allocation8 + $0x38] sm:$0xff]
        %v796 = vld [vmem:[#allocation8 + $0x40] sm:$0xff]
        %v797 = vld [vmem:[#allocation8 + $0x48] sm:$0xff]
        %v798 = vld [vmem:[#allocation8 + $0x50] sm:$0xff]
        %v799 = vld [vmem:[#allocation8 + $0x58] sm:$0xff]
        %v800 = vld [vmem:[#allocation8 + $0x60] sm:$0xff]
        %v801 = vld [vmem:[#allocation8 + $0x68] sm:$0xff]
        %v802 = vld [vmem:[#allocation8 + $0x70] sm:$0xff]
        %v803 = vld [vmem:[#allocation8 + $0x78] sm:$0xff]
        %v804 = vld [vmem:[#allocation8 + $0x80] sm:$0xff]
        %v805 = vld [vmem:[#allocation8 + $0x88] sm:$0xff]
        %v806 = vld [vmem:[#allocation8 + $0x90] sm:$0xff]
        %v807 = vld [vmem:[#allocation8 + $0x98] sm:$0xff]
        %v808 = vld [vmem:[#allocation8 + $0xa0] sm:$0xff]
        %v809 = vld [vmem:[#allocation8 + $0xa8] sm:$0xff]
        %v810 = vld [vmem:[#allocation8 + $0xb0] sm:$0xff]
        %v811 = vld [vmem:[#allocation8 + $0xb8] sm:$0xff]
        %v812 = vld [vmem:[#allocation8 + $0xc0] sm:$0xff]
        %v813 = vld [vmem:[#allocation8 + $0xc8] sm:$0xff]
        %v814 = vld [vmem:[#allocation8 + $0xd0] sm:$0xff]
        %v815 = vld [vmem:[#allocation8 + $0xd8] sm:$0xff]
        %v816 = vld [vmem:[#allocation8 + $0xe0] sm:$0xff]
        %v817 = vld [vmem:[#allocation8 + $0xe8] sm:$0xff]
        %v818 = vld [vmem:[#allocation8 + $0xf0] sm:$0xff]
        %v819 = vld [vmem:[#allocation8 + $0xf8] sm:$0xff]
        %820 = vmatprep.subr.mxu0 0.0
        %821 = vmatpush1.msra.mxu0 %v803
        %822 = vmatprep.subr.mxu0 0.0
        %823 = vmatpush1.msra.mxu0 %v802
        %824 = vmatprep.subr.mxu0 0.0
        %825 = vmatpush1.msra.mxu0 %v801
        %826 = vmatprep.subr.mxu0 0.0
        %827 = vmatpush1.msra.mxu0 %v800
        %828 = vmatprep.subr.mxu0 0.0
        %829 = vmatpush1.msra.mxu0 %v799
        %830 = vmatprep.subr.mxu0 0.0
        %831 = vmatpush1.msra.mxu0 %v798
        %832 = vmatprep.subr.mxu0 0.0
        %833 = vmatpush1.msra.mxu0 %v797
        %834 = vmatprep.subr.mxu0 0.0
        %835 = vmatpush1.msra.mxu0 %v796
        %836 = vmatprep.subr.mxu0 0.0
        %837 = vmatpush1.msra.mxu0 %v795
        %838 = vmatprep.subr.mxu0 0.0
        %839 = vmatpush1.msra.mxu0 %v794
        %840 = vmatprep.subr.mxu0 0.0
        %841 = vmatpush1.msra.mxu0 %v793
        %842 = vmatprep.subr.mxu0 0.0
        %843 = vmatpush1.msra.mxu0 %v792
        %844 = vmatprep.subr.mxu0 0.0
        %845 = vmatpush1.msra.mxu0 %v791
        %846 = vmatprep.subr.mxu0 0.0
        %847 = vmatpush1.msra.mxu0 %v790
        %848 = vmatprep.subr.mxu0 0.0
        %849 = vmatpush1.msra.mxu0 %v789
        %850 = vmatprep.subr.mxu0 0.0
        %851 = vmatpush1.msra.mxu0 %v788
        %852 = vmatprep.subr.mxu0 0.0
        %853 = vmatpush2.msra.mxu0 %v819
        %854 = vmatprep.subr.mxu0 0.0
        %855 = vmatpush2.msra.mxu0 %v818
        %856 = vmatprep.subr.mxu0 0.0
        %857 = vmatpush2.msra.mxu0 %v817
        %858 = vmatprep.subr.mxu0 0.0
        %859 = vmatpush2.msra.mxu0 %v816
        %860 = vmatprep.subr.mxu0 0.0
        %861 = vmatpush2.msra.mxu0 %v815
        %862 = vmatprep.subr.mxu0 0.0
        %863 = vmatpush2.msra.mxu0 %v814
        %864 = vmatprep.subr.mxu0 0.0
        %865 = vmatpush2.msra.mxu0 %v813
        %866 = vmatprep.subr.mxu0 0.0
        %867 = vmatpush2.msra.mxu0 %v812
        %868 = vmatprep.subr.mxu0 0.0
        %869 = vmatpush2.msra.mxu0 %v811
        %870 = vmatprep.subr.mxu0 0.0
        %871 = vmatpush2.msra.mxu0 %v810
        %872 = vmatprep.subr.mxu0 0.0
        %873 = vmatpush2.msra.mxu0 %v809
        %874 = vmatprep.subr.mxu0 0.0
        %875 = vmatpush2.msra.mxu0 %v808
        %876 = vmatprep.subr.mxu0 0.0
        %877 = vmatpush2.msra.mxu0 %v807
        %878 = vmatprep.subr.mxu0 0.0
        %879 = vmatpush2.msra.mxu0 %v806
        %880 = vmatprep.subr.mxu0 0.0
        %881 = vmatpush2.msra.mxu0 %v805
        %882 = vmatprep.subr.mxu0 0.0
        %883 = vmatpush2.msra.mxu0 %v804
        %884 = vmatprep.mubr.f32.mxu0 %v693
        %885 = vmatmul.mubr.f32.gmra.mxu0 %v692
        %v886 = vpop.f32.mrf.mxu0
        %v887 = vadd.f32 0.0, %v886
        %v888 = vpop.f32.mrf.mxu0
        %889 = vmatprep.mubr.f32.mxu0 %v695
        %890 = vmatmul.mubr.f32.gmra.mxu0 %v694
        %v891 = vpop.f32.mrf.mxu0
        %v892 = vadd.f32 0.0, %v891
        %v893 = vpop.f32.mrf.mxu0
        %894 = vmatprep.mubr.f32.mxu0 %v697
        %895 = vmatmul.mubr.f32.gmra.mxu0 %v696
        %v896 = vpop.f32.mrf.mxu0
        %v897 = vadd.f32 0.0, %v896
        %v898 = vpop.f32.mrf.mxu0
        %899 = vmatprep.mubr.f32.mxu0 %v699
        %900 = vmatmul.mubr.f32.gmra.mxu0 %v698
        %v901 = vpop.f32.mrf.mxu0
        %v902 = vadd.f32 0.0, %v901
        %v903 = vpop.f32.mrf.mxu0
        %904 = vmatprep.mubr.f32.mxu0 %v701
        %905 = vmatmul.mubr.f32.gmra.mxu0 %v700
        %v906 = vpop.f32.mrf.mxu0
        %v907 = vadd.f32 0.0, %v906
        %v908 = vpop.f32.mrf.mxu0
        %909 = vmatprep.mubr.f32.mxu0 %v703
        %910 = vmatmul.mubr.f32.gmra.mxu0 %v702
        %v911 = vpop.f32.mrf.mxu0
        %v912 = vadd.f32 0.0, %v911
        %v913 = vpop.f32.mrf.mxu0
        %914 = vmatprep.mubr.f32.mxu0 %v705
        %915 = vmatmul.mubr.f32.gmra.mxu0 %v704
        %v916 = vpop.f32.mrf.mxu0
        %v917 = vadd.f32 0.0, %v916
        %v918 = vpop.f32.mrf.mxu0
        %919 = vmatprep.mubr.f32.mxu0 %v707
        %920 = vmatmul.mubr.f32.gmra.mxu0 %v706
        %v921 = vpop.f32.mrf.mxu0
        %v922 = vadd.f32 0.0, %v921
        %v923 = vpop.f32.mrf.mxu0
        %924 = vmatprep.mubr.f32.mxu0 %v709
        %925 = vmatmul.mubr.f32.gmra.mxu0 %v708
        %v926 = vpop.f32.mrf.mxu0
        %v927 = vadd.f32 0.0, %v926
        %v928 = vpop.f32.mrf.mxu0
        %929 = vmatprep.mubr.f32.mxu0 %v711
        %930 = vmatmul.mubr.f32.gmra.mxu0 %v710
        %v931 = vpop.f32.mrf.mxu0
        %v932 = vadd.f32 0.0, %v931
        %v933 = vpop.f32.mrf.mxu0
        %934 = vmatprep.mubr.f32.mxu0 %v713
        %935 = vmatmul.mubr.f32.gmra.mxu0 %v712
        %v936 = vpop.f32.mrf.mxu0
        %v937 = vadd.f32 0.0, %v936
        %v938 = vpop.f32.mrf.mxu0
        %939 = vmatprep.mubr.f32.mxu0 %v715
        %940 = vmatmul.mubr.f32.gmra.mxu0 %v714
        %v941 = vpop.f32.mrf.mxu0
        %v942 = vadd.f32 0.0, %v941
        %v943 = vpop.f32.mrf.mxu0
        %944 = vmatprep.mubr.f32.mxu0 %v717
        %945 = vmatmul.mubr.f32.gmra.mxu0 %v716
        %v946 = vpop.f32.mrf.mxu0
        %v947 = vadd.f32 0.0, %v946
        %v948 = vpop.f32.mrf.mxu0
        %949 = vmatprep.mubr.f32.mxu0 %v719
        %950 = vmatmul.mubr.f32.gmra.mxu0 %v718
        %v951 = vpop.f32.mrf.mxu0
        %v952 = vadd.f32 0.0, %v951
        %v953 = vpop.f32.mrf.mxu0
        %954 = vmatprep.mubr.f32.mxu0 %v721
        %955 = vmatmul.mubr.f32.gmra.mxu0 %v720
        %v956 = vpop.f32.mrf.mxu0
        %v957 = vadd.f32 0.0, %v956
        %v958 = vpop.f32.mrf.mxu0
        %959 = vmatprep.mubr.f32.mxu0 %v723
        %960 = vmatmul.mubr.f32.gmra.mxu0 %v722
        %v961 = vpop.f32.mrf.mxu0
        %v962 = vadd.f32 0.0, %v961
        %v963 = vpop.f32.mrf.mxu0
        %964 = vmatprep.mubr.f32.mxu0 %v725
        %965 = vmatmul.mubr.f32.gmra.mxu0 %v724
        %v966 = vpop.f32.mrf.mxu0
        %v967 = vadd.f32 0.0, %v966
        %v968 = vpop.f32.mrf.mxu0
        %969 = vmatprep.mubr.f32.mxu0 %v727
        %970 = vmatmul.mubr.f32.gmra.mxu0 %v726
        %v971 = vpop.f32.mrf.mxu0
        %v972 = vadd.f32 0.0, %v971
        %v973 = vpop.f32.mrf.mxu0
        %974 = vmatprep.mubr.f32.mxu0 %v729
        %975 = vmatmul.mubr.f32.gmra.mxu0 %v728
        %v976 = vpop.f32.mrf.mxu0
        %v977 = vadd.f32 0.0, %v976
        %v978 = vpop.f32.mrf.mxu0
        %979 = vmatprep.mubr.f32.mxu0 %v731
        %980 = vmatmul.mubr.f32.gmra.mxu0 %v730
        %v981 = vpop.f32.mrf.mxu0
        %v982 = vadd.f32 0.0, %v981
        %v983 = vpop.f32.mrf.mxu0
        %984 = vmatprep.mubr.f32.mxu0 %v733
        %985 = vmatmul.mubr.f32.gmra.mxu0 %v732
        %v986 = vpop.f32.mrf.mxu0
        %v987 = vadd.f32 0.0, %v986
        %v988 = vpop.f32.mrf.mxu0
        %989 = vmatprep.mubr.f32.mxu0 %v735
        %990 = vmatmul.mubr.f32.gmra.mxu0 %v734
        %v991 = vpop.f32.mrf.mxu0
        %v992 = vadd.f32 0.0, %v991
        %v993 = vpop.f32.mrf.mxu0
        %994 = vmatprep.mubr.f32.mxu0 %v737
        %995 = vmatmul.mubr.f32.gmra.mxu0 %v736
        %v996 = vpop.f32.mrf.mxu0
        %v997 = vadd.f32 0.0, %v996
        %v998 = vpop.f32.mrf.mxu0
        %999 = vmatprep.mubr.f32.mxu0 %v739
        %1000 = vmatmul.mubr.f32.gmra.mxu0 %v738
        %v1001 = vpop.f32.mrf.mxu0
        %v1002 = vadd.f32 0.0, %v1001
        %v1003 = vpop.f32.mrf.mxu0
        %1004 = vmatprep.mubr.f32.mxu0 %v741
        %1005 = vmatmul.mubr.f32.gmra.mxu0 %v740
        %v1006 = vpop.f32.mrf.mxu0
        %v1007 = vadd.f32 0.0, %v1006
        %v1008 = vpop.f32.mrf.mxu0
        %1009 = vmatprep.mubr.f32.mxu0 %v743
        %1010 = vmatmul.mubr.f32.gmra.mxu0 %v742
        %v1011 = vpop.f32.mrf.mxu0
        %v1012 = vadd.f32 0.0, %v1011
        %v1013 = vpop.f32.mrf.mxu0
        %1014 = vmatprep.mubr.f32.mxu0 %v745
        %1015 = vmatmul.mubr.f32.gmra.mxu0 %v744
        %v1016 = vpop.f32.mrf.mxu0
        %v1017 = vadd.f32 0.0, %v1016
        %v1018 = vpop.f32.mrf.mxu0
        %1019 = vmatprep.mubr.f32.mxu0 %v747
        %1020 = vmatmul.mubr.f32.gmra.mxu0 %v746
        %v1021 = vpop.f32.mrf.mxu0
        %v1022 = vadd.f32 0.0, %v1021
        %v1023 = vpop.f32.mrf.mxu0
        %1024 = vmatprep.mubr.f32.mxu0 %v749
        %1025 = vmatmul.mubr.f32.gmra.mxu0 %v748
        %v1026 = vpop.f32.mrf.mxu0
        %v1027 = vadd.f32 0.0, %v1026
        %v1028 = vpop.f32.mrf.mxu0
        %1029 = vmatprep.mubr.f32.mxu0 %v751
        %1030 = vmatmul.mubr.f32.gmra.mxu0 %v750
        %v1031 = vpop.f32.mrf.mxu0
        %v1032 = vadd.f32 0.0, %v1031
        %v1033 = vpop.f32.mrf.mxu0
        %1034 = vmatprep.mubr.f32.mxu0 %v753
        %1035 = vmatmul.mubr.f32.gmra.mxu0 %v752
        %v1036 = vpop.f32.mrf.mxu0
        %v1037 = vadd.f32 0.0, %v1036
        %v1038 = vpop.f32.mrf.mxu0
        %1039 = vmatprep.mubr.f32.mxu0 %v755
        %1040 = vmatmul.mubr.f32.gmra.mxu0 %v754
        %v1041 = vpop.f32.mrf.mxu0
        %v1042 = vadd.f32 0.0, %v1041
        %v1043 = vpop.f32.mrf.mxu0
        %1044 = vdwg.mxu0
        %v1045 = vadd.f32 %v756, %v887
        %v1046 = vadd.f32 %v757, %v892
        %v1047 = vadd.f32 %v758, %v897
        %v1048 = vadd.f32 %v759, %v902
        %v1049 = vadd.f32 %v760, %v907
        %v1050 = vadd.f32 %v761, %v912
        %v1051 = vadd.f32 %v762, %v917
        %v1052 = vadd.f32 %v763, %v922
        %v1053 = vadd.f32 %v764, %v927
        %v1054 = vadd.f32 %v765, %v932
        %v1055 = vadd.f32 %v766, %v937
        %v1056 = vadd.f32 %v767, %v942
        %v1057 = vadd.f32 %v768, %v947
        %v1058 = vadd.f32 %v769, %v952
        %v1059 = vadd.f32 %v770, %v957
        %v1060 = vadd.f32 %v771, %v962
        %v1061 = vadd.f32 %v772, %v967
        %v1062 = vadd.f32 %v773, %v972
        %v1063 = vadd.f32 %v774, %v977
        %v1064 = vadd.f32 %v775, %v982
        %v1065 = vadd.f32 %v776, %v987
        %v1066 = vadd.f32 %v777, %v992
        %v1067 = vadd.f32 %v778, %v997
        %v1068 = vadd.f32 %v779, %v1002
        %v1069 = vadd.f32 %v780, %v1007
        %v1070 = vadd.f32 %v781, %v1012
        %v1071 = vadd.f32 %v782, %v1017
        %v1072 = vadd.f32 %v783, %v1022
        %v1073 = vadd.f32 %v784, %v1027
        %v1074 = vadd.f32 %v785, %v1032
        %v1075 = vadd.f32 %v786, %v1037
        %v1076 = vadd.f32 %v787, %v1042
        %1077 = vst [vmem:[#allocation2] sm:$0xff] %v1045
        %1078 = vst [vmem:[#allocation2 + $0x8] sm:$0xff] %v1046
        %1079 = vst [vmem:[#allocation2 + $0x10] sm:$0xff] %v1047
        %1080 = vst [vmem:[#allocation2 + $0x18] sm:$0xff] %v1048
        %1081 = vst [vmem:[#allocation2 + $0x20] sm:$0xff] %v1049
        %1082 = vst [vmem:[#allocation2 + $0x28] sm:$0xff] %v1050
        %1083 = vst [vmem:[#allocation2 + $0x30] sm:$0xff] %v1051
        %1084 = vst [vmem:[#allocation2 + $0x38] sm:$0xff] %v1052
        %1085 = vst [vmem:[#allocation2 + $0x40] sm:$0xff] %v1053
        %1086 = vst [vmem:[#allocation2 + $0x48] sm:$0xff] %v1054
        %1087 = vst [vmem:[#allocation2 + $0x50] sm:$0xff] %v1055
        %1088 = vst [vmem:[#allocation2 + $0x58] sm:$0xff] %v1056
        %1089 = vst [vmem:[#allocation2 + $0x60] sm:$0xff] %v1057
        %1090 = vst [vmem:[#allocation2 + $0x68] sm:$0xff] %v1058
        %1091 = vst [vmem:[#allocation2 + $0x70] sm:$0xff] %v1059
        %1092 = vst [vmem:[#allocation2 + $0x78] sm:$0xff] %v1060
        %1093 = vst [vmem:[#allocation2 + $0x80] sm:$0xff] %v1061
        %1094 = vst [vmem:[#allocation2 + $0x88] sm:$0xff] %v1062
        %1095 = vst [vmem:[#allocation2 + $0x90] sm:$0xff] %v1063
        %1096 = vst [vmem:[#allocation2 + $0x98] sm:$0xff] %v1064
        %1097 = vst [vmem:[#allocation2 + $0xa0] sm:$0xff] %v1065
        %1098 = vst [vmem:[#allocation2 + $0xa8] sm:$0xff] %v1066
        %1099 = vst [vmem:[#allocation2 + $0xb0] sm:$0xff] %v1067
        %1100 = vst [vmem:[#allocation2 + $0xb8] sm:$0xff] %v1068
        %1101 = vst [vmem:[#allocation2 + $0xc0] sm:$0xff] %v1069
        %1102 = vst [vmem:[#allocation2 + $0xc8] sm:$0xff] %v1070
        %1103 = vst [vmem:[#allocation2 + $0xd0] sm:$0xff] %v1071
        %1104 = vst [vmem:[#allocation2 + $0xd8] sm:$0xff] %v1072
        %1105 = vst [vmem:[#allocation2 + $0xe0] sm:$0xff] %v1073
        %1106 = vst [vmem:[#allocation2 + $0xe8] sm:$0xff] %v1074
        %1107 = vst [vmem:[#allocation2 + $0xf0] sm:$0xff] %v1075
        %1108 = vst [vmem:[#allocation2 + $0xf8] sm:$0xff] %v1076
        // Predicated region
        $region57: #{tpu_custom_call.1} parent=39 // pred_check
          %p1109 = pneg %p323
        $region58: #{tpu_custom_call.1} parent=39 // pred_check_branch
          %1111 = sbr.rel (%p1109) target = $region60
        $region59: #{tpu_custom_call.1} parent=39 // pred_region
          %v1112 = vld [vmem:[#allocation2] sm:$0xff]
          %v1113 = vld [vmem:[#allocation2 + $0x8] sm:$0xff]
          %v1114 = vld [vmem:[#allocation2 + $0x10] sm:$0xff]
          %v1115 = vld [vmem:[#allocation2 + $0x18] sm:$0xff]
          %v1116 = vld [vmem:[#allocation2 + $0x20] sm:$0xff]
          %v1117 = vld [vmem:[#allocation2 + $0x28] sm:$0xff]
          %v1118 = vld [vmem:[#allocation2 + $0x30] sm:$0xff]
          %v1119 = vld [vmem:[#allocation2 + $0x38] sm:$0xff]
          %v1120 = vld [vmem:[#allocation2 + $0x40] sm:$0xff]
          %v1121 = vld [vmem:[#allocation2 + $0x48] sm:$0xff]
          %v1122 = vld [vmem:[#allocation2 + $0x50] sm:$0xff]
          %v1123 = vld [vmem:[#allocation2 + $0x58] sm:$0xff]
          %v1124 = vld [vmem:[#allocation2 + $0x60] sm:$0xff]
          %v1125 = vld [vmem:[#allocation2 + $0x68] sm:$0xff]
          %v1126 = vld [vmem:[#allocation2 + $0x70] sm:$0xff]
          %v1127 = vld [vmem:[#allocation2 + $0x78] sm:$0xff]
          %v1128 = vld [vmem:[#allocation2 + $0x80] sm:$0xff]
          %v1129 = vld [vmem:[#allocation2 + $0x88] sm:$0xff]
          %v1130 = vld [vmem:[#allocation2 + $0x90] sm:$0xff]
          %v1131 = vld [vmem:[#allocation2 + $0x98] sm:$0xff]
          %v1132 = vld [vmem:[#allocation2 + $0xa0] sm:$0xff]
          %v1133 = vld [vmem:[#allocation2 + $0xa8] sm:$0xff]
          %v1134 = vld [vmem:[#allocation2 + $0xb0] sm:$0xff]
          %v1135 = vld [vmem:[#allocation2 + $0xb8] sm:$0xff]
          %v1136 = vld [vmem:[#allocation2 + $0xc0] sm:$0xff]
          %v1137 = vld [vmem:[#allocation2 + $0xc8] sm:$0xff]
          %v1138 = vld [vmem:[#allocation2 + $0xd0] sm:$0xff]
          %v1139 = vld [vmem:[#allocation2 + $0xd8] sm:$0xff]
          %v1140 = vld [vmem:[#allocation2 + $0xe0] sm:$0xff]
          %v1141 = vld [vmem:[#allocation2 + $0xe8] sm:$0xff]
          %v1142 = vld [vmem:[#allocation2 + $0xf0] sm:$0xff]
          %v1143 = vld [vmem:[#allocation2 + $0xf8] sm:$0xff]
          %v1144 = vld [vmem:[%s4] sm:$0x1]
          %v1146 = vlaneseq
          %v1147 = vshrl.u32 %v1146, 7
          %v1148 = vsub.s32 0, %v1147
          %v1149 = vrot.slane %v1144, %v1148
          %v1151 = vadd.f32 %v1112, %v1149
          %v1152 = vadd.f32 %v1113, %v1149
          %v1153 = vadd.f32 %v1114, %v1149
          %v1154 = vadd.f32 %v1115, %v1149
          %v1155 = vadd.f32 %v1116, %v1149
          %v1156 = vadd.f32 %v1117, %v1149
          %v1157 = vadd.f32 %v1118, %v1149
          %v1158 = vadd.f32 %v1119, %v1149
          %v1159 = vadd.f32 %v1120, %v1149
          %v1160 = vadd.f32 %v1121, %v1149
          %v1161 = vadd.f32 %v1122, %v1149
          %v1162 = vadd.f32 %v1123, %v1149
          %v1163 = vadd.f32 %v1124, %v1149
          %v1164 = vadd.f32 %v1125, %v1149
          %v1165 = vadd.f32 %v1126, %v1149
          %v1166 = vadd.f32 %v1127, %v1149
          %v1167 = vadd.f32 %v1128, %v1149
          %v1168 = vadd.f32 %v1129, %v1149
          %v1169 = vadd.f32 %v1130, %v1149
          %v1170 = vadd.f32 %v1131, %v1149
          %v1171 = vadd.f32 %v1132, %v1149
          %v1172 = vadd.f32 %v1133, %v1149
          %v1173 = vadd.f32 %v1134, %v1149
          %v1174 = vadd.f32 %v1135, %v1149
          %v1175 = vadd.f32 %v1136, %v1149
          %v1176 = vadd.f32 %v1137, %v1149
          %v1177 = vadd.f32 %v1138, %v1149
          %v1178 = vadd.f32 %v1139, %v1149
          %v1179 = vadd.f32 %v1140, %v1149
          %v1180 = vadd.f32 %v1141, %v1149
          %v1181 = vadd.f32 %v1142, %v1149
          %v1182 = vadd.f32 %v1143, %v1149
          %1183 = vst [vmem:[%s313] sm:$0xff] %v1151
          %1184 = vst [vmem:[%s313 + $0x8] sm:$0xff] %v1152
          %1185 = vst [vmem:[%s313 + $0x10] sm:$0xff] %v1153
          %1186 = vst [vmem:[%s313 + $0x18] sm:$0xff] %v1154
          %1187 = vst [vmem:[%s313 + $0x20] sm:$0xff] %v1155
          %1188 = vst [vmem:[%s313 + $0x28] sm:$0xff] %v1156
          %1189 = vst [vmem:[%s313 + $0x30] sm:$0xff] %v1157
          %1190 = vst [vmem:[%s313 + $0x38] sm:$0xff] %v1158
          %1191 = vst [vmem:[%s313 + $0x40] sm:$0xff] %v1159
          %1192 = vst [vmem:[%s313 + $0x48] sm:$0xff] %v1160
          %1193 = vst [vmem:[%s313 + $0x50] sm:$0xff] %v1161
          %1194 = vst [vmem:[%s313 + $0x58] sm:$0xff] %v1162
          %1195 = vst [vmem:[%s313 + $0x60] sm:$0xff] %v1163
          %1196 = vst [vmem:[%s313 + $0x68] sm:$0xff] %v1164
          %1197 = vst [vmem:[%s313 + $0x70] sm:$0xff] %v1165
          %1198 = vst [vmem:[%s313 + $0x78] sm:$0xff] %v1166
          %1199 = vst [vmem:[%s313 + $0x80] sm:$0xff] %v1167
          %1200 = vst [vmem:[%s313 + $0x88] sm:$0xff] %v1168
          %1201 = vst [vmem:[%s313 + $0x90] sm:$0xff] %v1169
          %1202 = vst [vmem:[%s313 + $0x98] sm:$0xff] %v1170
          %1203 = vst [vmem:[%s313 + $0xa0] sm:$0xff] %v1171
          %1204 = vst [vmem:[%s313 + $0xa8] sm:$0xff] %v1172
          %1205 = vst [vmem:[%s313 + $0xb0] sm:$0xff] %v1173
          %1206 = vst [vmem:[%s313 + $0xb8] sm:$0xff] %v1174
          %1207 = vst [vmem:[%s313 + $0xc0] sm:$0xff] %v1175
          %1208 = vst [vmem:[%s313 + $0xc8] sm:$0xff] %v1176
          %1209 = vst [vmem:[%s313 + $0xd0] sm:$0xff] %v1177
          %1210 = vst [vmem:[%s313 + $0xd8] sm:$0xff] %v1178
          %1211 = vst [vmem:[%s313 + $0xe0] sm:$0xff] %v1179
          %1212 = vst [vmem:[%s313 + $0xe8] sm:$0xff] %v1180
          %1213 = vst [vmem:[%s313 + $0xf0] sm:$0xff] %v1181
          %1214 = vst [vmem:[%s313 + $0xf8] sm:$0xff] %v1182
        $region60: #{tpu_custom_call.1} parent=39 // pred_fallthru
          _
        %s1215 = sand.u32 %s168, 1
        %s1216 = scalar_lea.sflag [#allocation5], %s1215
        %s1217 = sand.u32 %s168, 1
        %s1218 = smul.addr %s1217, 256
        %s1219 = scalar_lea.vmem [#allocation9], %s1218
        // Predicated region
        $region61: #{tpu_custom_call.1} parent=39 // pred_check
          %p1220 = pneg %p178
        $region62: #{tpu_custom_call.1} parent=39 // pred_check_branch
          %1222 = sbr.rel (%p1220) target = $region64
        $region63: #{tpu_custom_call.1} parent=39 // pred_region
          %s1223 = smul.u32 32, %s27
          %s1225 = ssub.s32 4096, 4096
          %1226 = vsyncadd %s1216, %s1225
          %s1227 = smul.addr %s1223, 128
          %s1228 = scalar_lea.hbm %s5, %s1227
          %s1229 = sshll.u32 %s1219, 4
          %s1230 = int_to_ptr.vmem [resolvable:$true] %s1229
          %1235 = dma.vmem_to_hbm [thread:$0]  %s1230, 4096, %s1228, %s1216, 128, 128, 8
        $region64: #{tpu_custom_call.1} parent=39 // pred_fallthru
          _
      $region40: #{tpu_custom_call.1} parent=5 // pred_fallthru
        _
      %p1236 = scmp.le.s32.totalorder 2, %s18
      // Predicated region
      $region65: #{tpu_custom_call.1} parent=5 // pred_check
        %p1237 = pneg %p1236
      $region66: #{tpu_custom_call.1} parent=5 // pred_check_branch
        %1239 = sbr.rel (%p1237) target = $region68
      $region67: #{tpu_custom_call.1} parent=5 // pred_region
        %s1240 = ssub.s32 %s18, 2
        // Predicated region
        $region69: #{tpu_custom_call.1} parent=67 // pred_check
          %p1241 = pneg %p184
        $region70: #{tpu_custom_call.1} parent=67 // pred_check_branch
          %1243 = sbr.rel (%p1241) target = $region72
        $region71: #{tpu_custom_call.1} parent=67 // pred_region
          %s1244 = sand.u32 %s169, 1
          %s1245 = scalar_lea.sflag [#allocation5], %s1244
          %s1246 = sand.u32 %s169, 1
          %s1247 = smul.addr %s1246, 256
          %s1248 = scalar_lea.vmem [#allocation9], %s1247
          %1249 = dma.done %s1245, 4096
        $region72: #{tpu_custom_call.1} parent=67 // pred_fallthru
          _
      $region68: #{tpu_custom_call.1} parent=5 // pred_fallthru
        _
    $region6: #{tpu_custom_call.1} parent=1 // loop_footer
      %s22 = sadd.s32 1, %s18
    $region7: #{tpu_custom_call.1} parent=1 // loop_footer_branch
      %17 = sbr.rel target = $region3
    $region8: #{tpu_custom_call.1} parent=1 // loop_exit
      _
    %1250 = vsyncpa [#allocation4], 1
    %s1251 = scalar_lea.sflag [#allocation4], 1
    %1252 = vsyncpa %s1251, 1
    %1253 = vsyncpa [#allocation7], 1
    %1254 = vsyncpa [#allocation5], 1
    %s1255 = scalar_lea.sflag [#allocation5], 1
    %1256 = vsyncpa %s1255, 1

</llo_original>
